<compile_context>
chip_gen: v5e
topology: v5e:2x2
jax: 0.10.0
libtpu: 0.0.40
codegen_flags: <defaults>
</compile_context>

<pallas_src>
import functools

import jax
import jax.numpy as jnp
from jax.experimental import pallas as pl
from jax.experimental.pallas import tpu as pltpu


# ---------------------------------------------------------------------------
# Kernel bodies
# ---------------------------------------------------------------------------

def _build_x(s_ref, a_ref, pad):
    """Build the layer-1 operand [tb, k_pad] in bf16: [state | action | 0-pad]."""
    s = s_ref[...]
    a = a_ref[...]
    parts = [s, a]
    if pad:
        parts.append(jnp.zeros((s.shape[0], pad), s.dtype))
    return jnp.concatenate(parts, axis=-1).astype(jnp.bfloat16)


def _q_head(x, w1_ref, b1_ref, w2_ref, b2_ref, w3_ref, b3_ref, l1_f32):
    """One critic head on a [tb, k_pad] bf16 operand -> q: [tb] f32."""
    if l1_f32:
        # f32 layer-1 epilogue (v5e and older: no bf16 VPU path).
        h1 = jnp.dot(x, w1_ref[...], preferred_element_type=jnp.float32)
        h1 = jnp.maximum(h1 + b1_ref[...], 0.0).astype(jnp.bfloat16)
    else:
        # bf16 layer-1 epilogue (v6e / v7x): halves VALU work, no recast.
        h1 = jnp.dot(x, w1_ref[...], preferred_element_type=jnp.bfloat16)
        h1 = jnp.maximum(h1 + b1_ref[...].astype(jnp.bfloat16), 0.0)
    # Layer 2: bf16 operands, f32 accumulation / elementwise.
    h2 = jnp.dot(h1, w2_ref[...], preferred_element_type=jnp.float32)
    h2 = jnp.maximum(h2 + b2_ref[...], 0.0)
    # Layer 3: output width 1 -> VPU multiply + lane reduce instead of an MXU
    # matmul that would use 1/256 of the array.  b3 scalar comes from SMEM.
    return jnp.sum(h2 * w3_ref[...], axis=-1) + b3_ref[0]


def _critic_kernel(s_ref, a_ref, w1_ref, b1_ref, w2_ref, b2_ref, w3_ref,
                   b3_ref, o_ref, *, pad, l1_f32):
    x = _build_x(s_ref, a_ref, pad)
    q = _q_head(x, w1_ref, b1_ref, w2_ref, b2_ref, w3_ref, b3_ref, l1_f32)
    o_ref[0, 0] = q.astype(o_ref.dtype)          # lane-dense (1, 1, tb) block


def _critic2_kernel(s_ref, a_ref,
                    w1a_ref, b1a_ref, w2a_ref, b2a_ref, w3a_ref, b3a_ref,
                    w1b_ref, b1b_ref, w2b_ref, b2b_ref, w3b_ref, b3b_ref,
                    o1_ref, o2_ref, *, pad, l1_f32):
    """Fused twin critics: shares the state/action tiles and layer-1 operand."""
    x = _build_x(s_ref, a_ref, pad)
    q1 = _q_head(x, w1a_ref, b1a_ref, w2a_ref, b2a_ref, w3a_ref, b3a_ref, l1_f32)
    q2 = _q_head(x, w1b_ref, b1b_ref, w2b_ref, b2b_ref, w3b_ref, b3b_ref, l1_f32)
    o1_ref[0, 0] = q1.astype(o1_ref.dtype)
    o2_ref[0, 0] = q2.astype(o2_ref.dtype)


# ---------------------------------------------------------------------------
# Wrappers
# ---------------------------------------------------------------------------

def _l1_in_bf16():
    """Use the bf16 layer-1 epilogue only on chips with a bf16 VPU (v6e/v7x+)."""
    try:
        kind = jax.devices()[0].device_kind.lower()
    except Exception:
        return False
    if "tpu" not in kind:
        return False
    return not any(v in kind for v in ("v2", "v3", "v4", "v5"))


def _choose_batch_tile(B, batch_tile):
    """Batch tile: multiple of 8 (or == B); >=2 grid steps for mid-size B."""
    batch_tile = max(8, batch_tile)
    if B <= 16:
        return B                                    # tiny batch: one block
    if B <= 2 * batch_tile:
        # Split into (at least) two grid steps so both v7x TensorCores get
        # work; 8-aligned, last block may be ragged.
        return min(B, ((B + 1) // 2 + 7) // 8 * 8)
    if batch_tile >= 256:
        return (batch_tile // 256) * 256            # full 256-wide MXU passes
    return (batch_tile // 8) * 8


def _weight_specs(k_pad, hidden):
    rep = lambda i: (0, 0)                          # replicated across batch grid
    return [
        pl.BlockSpec((k_pad, hidden), rep),                  # w1 (bf16, K-padded)
        pl.BlockSpec((1, hidden), rep),                      # b1 (f32)
        pl.BlockSpec((hidden, hidden), rep),                 # w2 (bf16)
        pl.BlockSpec((1, hidden), rep),                      # b2 (f32)
        pl.BlockSpec((1, hidden), rep),                      # w3 row (f32)
        pl.BlockSpec(memory_space=pltpu.MemorySpace.SMEM),   # b3 scalar
    ]


def critic_forward(state, action, params, *, batch_tile=1024, l1_bf16=None):
    """state: [B, state_dim], action: [B, action_dim] -> Q: [B, 1] (f32)."""
    w1, b1, w2, b2, w3, b3 = params
    B, s_dim = state.shape
    a_dim = action.shape[1]
    k_pad, hidden = w1.shape
    if l1_bf16 is None:
        l1_bf16 = _l1_in_bf16()

    tb = _choose_batch_tile(B, batch_tile)
    nblk = pl.cdiv(B, tb)

    out = pl.pallas_call(
        functools.partial(_critic_kernel, pad=k_pad - (s_dim + a_dim),
                          l1_f32=not l1_bf16),
        out_shape=jax.ShapeDtypeStruct((nblk, 1, tb), jnp.float32),
        grid=(nblk,),
        in_specs=[
            pl.BlockSpec((tb, s_dim), lambda i: (i, 0)),     # state tile
            pl.BlockSpec((tb, a_dim), lambda i: (i, 0)),     # action tile
            *_weight_specs(k_pad, hidden),
        ],
        out_specs=pl.BlockSpec((1, 1, tb), lambda i: (i, 0, 0)),  # lane-dense
        compiler_params=pltpu.CompilerParams(
            dimension_semantics=("parallel",)),
    )(state, action, w1, b1, w2, b2, w3, b3)
    # Lane-dense (nblk, 1, tb) rows -> (B, 1); ragged tail rows are dropped.
    return out.reshape(nblk * tb)[:B].reshape(B, 1)


def critic2_forward(state, action, params1, params2, *, batch_tile=1024,
                    l1_bf16=None):
    """Fused twin critics: one pallas_call -> (Q1, Q2), each [B, 1] f32."""
    k_pad, hidden = params1[0].shape
    B, s_dim = state.shape
    a_dim = action.shape[1]
    if l1_bf16 is None:
        l1_bf16 = _l1_in_bf16()

    tb = _choose_batch_tile(B, batch_tile)
    nblk = pl.cdiv(B, tb)
    out_sd = jax.ShapeDtypeStruct((nblk, 1, tb), jnp.float32)
    out_spec = pl.BlockSpec((1, 1, tb), lambda i: (i, 0, 0))

    q1, q2 = pl.pallas_call(
        functools.partial(_critic2_kernel, pad=k_pad - (s_dim + a_dim),
                          l1_f32=not l1_bf16),
        out_shape=(out_sd, out_sd),
        grid=(nblk,),
        in_specs=[
            pl.BlockSpec((tb, s_dim), lambda i: (i, 0)),
            pl.BlockSpec((tb, a_dim), lambda i: (i, 0)),
            *_weight_specs(k_pad, hidden),
            *_weight_specs(k_pad, hidden),
        ],
        out_specs=(out_spec, out_spec),
        compiler_params=pltpu.CompilerParams(
            dimension_semantics=("parallel",)),
    )(state, action, *params1, *params2)

    to_col = lambda o: o.reshape(nblk * tb)[:B].reshape(B, 1)
    return to_col(q1), to_col(q2)


# ---------------------------------------------------------------------------
# Params / reference
# ---------------------------------------------------------------------------

def init_critic_params(key, state_dim, action_dim, hidden=256):
    """PyTorch-style init U(-1/sqrt(fan_in), 1/sqrt(fan_in)), done in f32.

    Returns (f32_master_params, kernel_params).  kernel_params has w1 zero-
    padded along K to a multiple of 16 and weights cast to bf16, matching
    critic_forward / critic2_forward.
    """
    def linear_init(k, fan_in, fan_out):
        kw, kb = jax.random.split(k)
        bound = 1.0 / jnp.sqrt(fan_in)
        w = jax.random.uniform(kw, (fan_in, fan_out), jnp.float32, -bound, bound)
        b = jax.random.uniform(kb, (1, fan_out), jnp.float32, -bound, bound)
        return w, b

    k1, k2, k3 = jax.random.split(key, 3)
    in_dim = state_dim + action_dim
    w1, b1 = linear_init(k1, in_dim, hidden)
    w2, b2 = linear_init(k2, hidden, hidden)
    w3, b3 = linear_init(k3, hidden, 1)
    master = (w1, b1, w2, b2, w3, b3)

    k_pad = max(16, -(-in_dim // 16) * 16)          # bf16 sublane packing
    w1_pad = jnp.zeros((k_pad, hidden), jnp.float32).at[:in_dim].set(w1)

    kernel_params = (
        w1_pad.astype(jnp.bfloat16),                # [k_pad, 256] bf16, K-padded
        b1,                                         # f32
        w2.astype(jnp.bfloat16),
        b2,                                         # f32
        w3.reshape(1, hidden),                      # w3 as a row, f32 (tiny)
        b3.reshape(1),                              # scalar for SMEM
    )
    return master, kernel_params


def critic_ref(state, action, master_params):
    """Pure-JAX f32 reference matching the PyTorch module."""
    w1, b1, w2, b2, w3, b3 = master_params
    x = jnp.concatenate([state, action], axis=-1)
    h1 = jnp.maximum(x @ w1 + b1, 0.0)
    h2 = jnp.maximum(h1 @ w2 + b2, 0.0)
    return h2 @ w3 + b3


if __name__ == "__main__":
    # Hopper-v2 dimensions: state_dim=11, action_dim=3.
    state_dim, action_dim = 11, 3

    key = jax.random.PRNGKey(0)
    k_p1, k_p2, k_s, k_a = jax.random.split(key, 4)
    master1, params1 = init_critic_params(k_p1, state_dim, action_dim)
    master2, params2 = init_critic_params(k_p2, state_dim, action_dim)

    def check(q, q_ref):
        assert q.shape == q_ref.shape, (q.shape, q_ref.shape)
        # bf16 weights/activations -> loosened tolerance vs. the f32 reference.
        assert jnp.allclose(q, q_ref, atol=5e-2, rtol=5e-2), (
            float(jnp.max(jnp.abs(q - q_ref))))

    # Single critic: tiny batch (one block), ragged batch (2 blocks, last
    # block ragged) and an even mid-size batch (2 full blocks).
    for batch in (2, 300, 512):
        state = jax.random.normal(k_s, (batch, state_dim), jnp.float32)
        action = jax.random.normal(k_a, (batch, action_dim), jnp.float32)
        q = jax.block_until_ready(critic_forward(state, action, params1))
        check(q, critic_ref(state, action, master1))

    # Fused twin critics (one pallas_call for Q1 and Q2), SAC-style batch.
    batch = 256
    state = jax.random.normal(k_s, (batch, state_dim), jnp.float32)
    action = jax.random.normal(k_a, (batch, action_dim), jnp.float32)
    q1, q2 = jax.block_until_ready(
        critic2_forward(state, action, params1, params2))
    check(q1, critic_ref(state, action, master1))
    check(q2, critic_ref(state, action, master2))

    print("KERNEL_OK")
</pallas_src>

<mosaic_0001>
module attributes {stable_mosaic.version = 11 : i64} {
  func.func @_critic_kernel(%arg0: i32, %arg1: memref<2x11xf32, #tpu.memory_space<vmem>>, %arg2: memref<2x3xf32, #tpu.memory_space<vmem>>, %arg3: memref<16x256xbf16, #tpu.memory_space<vmem>>, %arg4: memref<1x256xf32, #tpu.memory_space<vmem>>, %arg5: memref<256x256xbf16, #tpu.memory_space<vmem>>, %arg6: memref<1x256xf32, #tpu.memory_space<vmem>>, %arg7: memref<1x256xf32, #tpu.memory_space<vmem>>, %arg8: memref<1xf32, #tpu.memory_space<smem>>, %arg9: memref<1x1x2xf32, #tpu.memory_space<vmem>>) attributes {dimension_semantics = [#tpu.dimension_semantics<parallel>], iteration_bounds = array<i64: 1>, scalar_prefetch = 0 : i64, scratch_operands = 0 : i64, tpu.core_type = #tpu.core_type<tc>, window_params = [{transform_indices = @transform_0, window_bounds = array<i64: 2, 11>}, {transform_indices = @transform_1, window_bounds = array<i64: 2, 3>}, {pipeline_mode = #tpu.pipeline_mode<synchronous>, transform_indices = @transform_2, window_bounds = array<i64: 16, 256>}, {pipeline_mode = #tpu.pipeline_mode<synchronous>, transform_indices = @transform_3, window_bounds = array<i64: 1, 256>}, {pipeline_mode = #tpu.pipeline_mode<synchronous>, transform_indices = @transform_4, window_bounds = array<i64: 256, 256>}, {pipeline_mode = #tpu.pipeline_mode<synchronous>, transform_indices = @transform_5, window_bounds = array<i64: 1, 256>}, {pipeline_mode = #tpu.pipeline_mode<synchronous>, transform_indices = @transform_6, window_bounds = array<i64: 1, 256>}, {transform_indices = @transform_7, window_bounds = array<i64: 1>}, {transform_indices = @transform_8, window_bounds = array<i64: 1, 1, 2>}]} {
    %c0 = arith.constant 0 : index
    %c0_0 = arith.constant 0 : index
    %0 = vector.load %arg1[%c0, %c0_0] : memref<2x11xf32, #tpu.memory_space<vmem>>, vector<2x11xf32>
    %c0_1 = arith.constant 0 : index
    %c0_2 = arith.constant 0 : index
    %1 = vector.load %arg2[%c0_1, %c0_2] : memref<2x3xf32, #tpu.memory_space<vmem>>, vector<2x3xf32>
    %cst = arith.constant 0.000000e+00 : f32
    %2 = vector.broadcast %cst : f32 to vector<2x2xf32>
    %3 = tpu.concatenate %0, %1, %2 in 1 : vector<2x11xf32>, vector<2x3xf32>, vector<2x2xf32> -> vector<2x16xf32>
    %4 = arith.truncf %3 : vector<2x16xf32> to vector<2x16xbf16>
    %c0_3 = arith.constant 0 : index
    %c0_4 = arith.constant 0 : index
    %5 = vector.load %arg3[%c0_3, %c0_4] : memref<16x256xbf16, #tpu.memory_space<vmem>>, vector<16x256xbf16>
    %cst_5 = arith.constant dense<0.000000e+00> : vector<2x256xf32>
    %6 = tpu.matmul %4, %5, %cst_5 {dimension_numbers = #tpu.dot_dimension_numbers<[1], [0], [0], [1], [0, 0, 1, 1], [], []>} : vector<2x16xbf16>, vector<16x256xbf16>, vector<2x256xf32> -> vector<2x256xf32>
    %c0_6 = arith.constant 0 : index
    %c0_7 = arith.constant 0 : index
    %7 = vector.load %arg4[%c0_6, %c0_7] : memref<1x256xf32, #tpu.memory_space<vmem>>, vector<1x256xf32>
    %8 = vector.broadcast %7 : vector<1x256xf32> to vector<2x256xf32>
    %9 = arith.addf %6, %8 : vector<2x256xf32>
    %cst_8 = arith.constant 0.000000e+00 : f32
    %10 = vector.broadcast %cst_8 : f32 to vector<2x256xf32>
    %11 = arith.maximumf %9, %10 : vector<2x256xf32>
    %12 = arith.truncf %11 : vector<2x256xf32> to vector<2x256xbf16>
    %c0_9 = arith.constant 0 : index
    %c0_10 = arith.constant 0 : index
    %13 = vector.load %arg5[%c0_9, %c0_10] : memref<256x256xbf16, #tpu.memory_space<vmem>>, vector<256x256xbf16>
    %cst_11 = arith.constant dense<0.000000e+00> : vector<2x256xf32>
    %14 = tpu.matmul %12, %13, %cst_11 {dimension_numbers = #tpu.dot_dimension_numbers<[1], [0], [0], [1], [0, 0, 1, 1], [], []>} : vector<2x256xbf16>, vector<256x256xbf16>, vector<2x256xf32> -> vector<2x256xf32>
    %c0_12 = arith.constant 0 : index
    %c0_13 = arith.constant 0 : index
    %15 = vector.load %arg6[%c0_12, %c0_13] : memref<1x256xf32, #tpu.memory_space<vmem>>, vector<1x256xf32>
    %16 = vector.broadcast %15 : vector<1x256xf32> to vector<2x256xf32>
    %17 = arith.addf %14, %16 : vector<2x256xf32>
    %cst_14 = arith.constant 0.000000e+00 : f32
    %18 = vector.broadcast %cst_14 : f32 to vector<2x256xf32>
    %19 = arith.maximumf %17, %18 : vector<2x256xf32>
    %c0_15 = arith.constant 0 : index
    %c0_16 = arith.constant 0 : index
    %20 = vector.load %arg7[%c0_15, %c0_16] : memref<1x256xf32, #tpu.memory_space<vmem>>, vector<1x256xf32>
    %21 = vector.broadcast %20 : vector<1x256xf32> to vector<2x256xf32>
    %22 = arith.mulf %19, %21 : vector<2x256xf32>
    %cst_17 = arith.constant dense<0.000000e+00> : vector<2xf32>
    %23 = vector.multi_reduction <add>, %22, %cst_17 [1] : vector<2x256xf32> to vector<2xf32>
    %c0_18 = arith.constant 0 : index
    %24 = memref.load %arg8[%c0_18] : memref<1xf32, #tpu.memory_space<smem>>
    %25 = vector.broadcast %24 : f32 to vector<2xf32>
    %26 = arith.addf %23, %25 : vector<2xf32>
    %c0_19 = arith.constant 0 : index
    %c0_20 = arith.constant 0 : index
    %c0_21 = arith.constant 0 : index
    %27 = vector.load %arg9[%c0_19, %c0_20, %c0_21] : memref<1x1x2xf32, #tpu.memory_space<vmem>>, vector<1x1x2xf32>
    %28 = vector.shape_cast %27 : vector<1x1x2xf32> to vector<2xf32>
    %29 = vector.shape_cast %26 : vector<2xf32> to vector<1x1x2xf32>
    tpu.vector_store %arg9[%c0_19, %c0_20, %c0_21], %29 {strides = array<i32>} : memref<1x1x2xf32, #tpu.memory_space<vmem>>, vector<1x1x2xf32>,
    return
  }
  func.func @transform_0(%arg0: i32) -> (i32, i32) {
    %c0_i32 = arith.constant 0 : i32
    %c0_i32_0 = arith.constant 0 : i32
    return %arg0, %c0_i32 : i32, i32
  }
  func.func @transform_1(%arg0: i32) -> (i32, i32) {
    %c0_i32 = arith.constant 0 : i32
    %c0_i32_0 = arith.constant 0 : i32
    return %arg0, %c0_i32 : i32, i32
  }
  func.func @transform_2(%arg0: i32) -> (i32, i32) {
    %c0_i32 = arith.constant 0 : i32
    %c0_i32_0 = arith.constant 0 : i32
    %c0_i32_1 = arith.constant 0 : i32
    return %c0_i32, %c0_i32_0 : i32, i32
  }
  func.func @transform_3(%arg0: i32) -> (i32, i32) {
    %c0_i32 = arith.constant 0 : i32
    %c0_i32_0 = arith.constant 0 : i32
    %c0_i32_1 = arith.constant 0 : i32
    return %c0_i32, %c0_i32_0 : i32, i32
  }
  func.func @transform_4(%arg0: i32) -> (i32, i32) {
    %c0_i32 = arith.constant 0 : i32
    %c0_i32_0 = arith.constant 0 : i32
    %c0_i32_1 = arith.constant 0 : i32
    return %c0_i32, %c0_i32_0 : i32, i32
  }
  func.func @transform_5(%arg0: i32) -> (i32, i32) {
    %c0_i32 = arith.constant 0 : i32
    %c0_i32_0 = arith.constant 0 : i32
    %c0_i32_1 = arith.constant 0 : i32
    return %c0_i32, %c0_i32_0 : i32, i32
  }
  func.func @transform_6(%arg0: i32) -> (i32, i32) {
    %c0_i32 = arith.constant 0 : i32
    %c0_i32_0 = arith.constant 0 : i32
    %c0_i32_1 = arith.constant 0 : i32
    return %c0_i32, %c0_i32_0 : i32, i32
  }
  func.func @transform_7(%arg0: i32) -> i32 {
    %c0_i32 = arith.constant 0 : i32
    %c0_i32_0 = arith.constant 0 : i32
    return %c0_i32 : i32
  }
  func.func @transform_8(%arg0: i32) -> (i32, i32, i32) {
    %c0_i32 = arith.constant 0 : i32
    %c0_i32_0 = arith.constant 0 : i32
    %c0_i32_1 = arith.constant 0 : i32
    return %arg0, %c0_i32, %c0_i32_0 : i32, i32, i32
  }
}

</mosaic_0001>

<llo_original>
// kernel: tpu_custom_call.1
$region0: #{tpu_custom_call.1}
  #allocation0 [shape = 'u32[]', space=smem, size = 0x4, offset = 0x4, fixed_abs, tag = 'smem constant byte address 0x4 - core index']
  #allocation1 [shape = 'u32[72,128]{1,0:T(1,128)}', space=vmem, size = 0x9000, scoped, tag = 'internal scratch']
  #allocation2 [shape = 'f32[1]{0:T(128)S(6)}', space=smem, size = 0x200, scoped, tag = 'scoped memory for tpu_custom_call.1']
  %s0 = inlined_call_operand.vmem [shape: f32[2,11], index: 0, kind: input, shape index: {}]
  %s1 = inlined_call_operand.hbm [shape: f32[2,3], index: 1, kind: input, shape index: {}]
  %s2 = inlined_call_operand.hbm [shape: bf16[16,256], index: 2, kind: input, shape index: {}]
  %s3 = inlined_call_operand.vmem [shape: f32[1,256], index: 3, kind: input, shape index: {}]
  %s4 = inlined_call_operand.hbm [shape: bf16[256,256], index: 4, kind: input, shape index: {}]
  %s5 = inlined_call_operand.vmem [shape: f32[1,256], index: 5, kind: input, shape index: {}]
  %s6 = inlined_call_operand.hbm [shape: f32[1,256], index: 6, kind: input, shape index: {}]
  %s7 = inlined_call_operand.<no memory space> [shape: f32[1], index: 7, kind: input, shape index: {}]
  %s8 = inlined_call_operand.hbm [shape: f32[1,1,2], index: 8, kind: output, shape index: {}]
  %s9 = sld [smem:[#allocation0]]
  $region58: #{tpu_custom_call.1} parent=0
    _
  %s11 = ssub.s32 1, %s9
  %s12 = scalar_select 0, %s11, %s9
  %13 = sst [smem:[#allocation2]] %s7
  $region1: #{tpu_custom_call.1} parent=0
    #allocation3 [shape = 'u8[1024]{0}', space=vmem, size = 0x400, scoped, tag = 'input window, operand 1, single buffered']
    #allocation4 [shape = 's32[1]{0}', space=sflag, size = 0x4, scoped, tag = 'scoped memory for tpu_custom_call.1']
    #allocation5 [shape = 's32[1]{0}', space=sflag, size = 0x4, scoped, tag = 'scoped memory for tpu_custom_call.1']
    #allocation6 [shape = 'u8[8192]{0}', space=vmem, size = 0x2000, scoped, tag = 'input window, operand 2, single buffered']
    #allocation7 [shape = 's32[1]{0}', space=sflag, size = 0x4, scoped, tag = 'scoped memory for tpu_custom_call.1']
    #allocation8 [shape = 'u8[131072]{0}', space=vmem, size = 0x20000, scoped, tag = 'input window, operand 4, single buffered']
    #allocation9 [shape = 'u8[1024]{0}', space=vmem, size = 0x400, scoped, tag = 'input window, operand 6, single buffered']
    #allocation10 [shape = 's32[1]{0}', space=sflag, size = 0x4, scoped, tag = 'scoped memory for tpu_custom_call.1']
    #allocation11 [shape = 'u8[512]{0}', space=vmem, size = 0x400, scoped, tag = 'output window, operand 0, single buffered']
    %14 = vsyncpa [#allocation4], 0
    %15 = vsyncpa [#allocation7], 0
    %16 = vsyncpa [#allocation10], 0
    %17 = vsyncpa [#allocation5], 0
    // Predicated region
    $region2: #{tpu_custom_call.1} parent=1 // pred_check
      _
    $region3: #{tpu_custom_call.1} parent=1 // pred_check_branch
      %19 = sbr.rel (0) target = $region5
    $region4: #{tpu_custom_call.1} parent=1 // pred_region
      _
    $region5: #{tpu_custom_call.1} parent=1 // pred_fallthru
      _
    // Predicated region
    $region6: #{tpu_custom_call.1} parent=1 // pred_check
      _
    $region7: #{tpu_custom_call.1} parent=1 // pred_check_branch
      %21 = sbr.rel (0) target = $region9
    $region8: #{tpu_custom_call.1} parent=1 // pred_region
      %23 = vsyncadd [#allocation4], 0
      %s25 = sshll.u32 %s1, 4
      %s26 = int_to_ptr.hbm [resolvable:$true] %s25
      %s27 = sshll.u32 [#allocation3], 4
      %s28 = int_to_ptr.vmem [resolvable:$true] %s27
      %30 = dma.hbm_to_vmem [thread:$0]  %s26, 32, %s28, [#allocation4]
    $region9: #{tpu_custom_call.1} parent=1 // pred_fallthru
      _
    // Predicated region
    $region10: #{tpu_custom_call.1} parent=1 // pred_check
      _
    $region11: #{tpu_custom_call.1} parent=1 // pred_check_branch
      %32 = sbr.rel (0) target = $region13
    $region12: #{tpu_custom_call.1} parent=1 // pred_region
      %34 = vsyncadd [#allocation7], 0
      %s35 = sshll.u32 %s2, 4
      %s36 = int_to_ptr.hbm [resolvable:$true] %s35
      %s37 = sshll.u32 [#allocation6], 4
      %s38 = int_to_ptr.vmem [resolvable:$true] %s37
      %43 = dma.hbm_to_vmem [thread:$0]  %s36, 256, %s38, [#allocation7], 128, 128, 8
    $region13: #{tpu_custom_call.1} parent=1 // pred_fallthru
      _
    // Predicated region
    $region14: #{tpu_custom_call.1} parent=1 // pred_check
      _
    $region15: #{tpu_custom_call.1} parent=1 // pred_check_branch
      %45 = sbr.rel (0) target = $region17
    $region16: #{tpu_custom_call.1} parent=1 // pred_region
      _
    $region17: #{tpu_custom_call.1} parent=1 // pred_fallthru
      _
    // Predicated region
    $region18: #{tpu_custom_call.1} parent=1 // pred_check
      _
    $region19: #{tpu_custom_call.1} parent=1 // pred_check_branch
      %47 = sbr.rel (0) target = $region21
    $region20: #{tpu_custom_call.1} parent=1 // pred_region
      %49 = vsyncadd [#allocation7], 0
      %s50 = sshll.u32 %s4, 4
      %s51 = int_to_ptr.hbm [resolvable:$true] %s50
      %s52 = sshll.u32 [#allocation8], 4
      %s53 = int_to_ptr.vmem [resolvable:$true] %s52
      %58 = dma.hbm_to_vmem [thread:$0]  %s51, 4096, %s53, [#allocation7], 128, 128, 8
    $region21: #{tpu_custom_call.1} parent=1 // pred_fallthru
      _
    // Predicated region
    $region22: #{tpu_custom_call.1} parent=1 // pred_check
      _
    $region23: #{tpu_custom_call.1} parent=1 // pred_check_branch
      %60 = sbr.rel (0) target = $region25
    $region24: #{tpu_custom_call.1} parent=1 // pred_region
      _
    $region25: #{tpu_custom_call.1} parent=1 // pred_fallthru
      _
    // Predicated region
    $region26: #{tpu_custom_call.1} parent=1 // pred_check
      _
    $region27: #{tpu_custom_call.1} parent=1 // pred_check_branch
      %62 = sbr.rel (0) target = $region29
    $region28: #{tpu_custom_call.1} parent=1 // pred_region
      %64 = vsyncadd [#allocation10], 0
      %s66 = sshll.u32 %s6, 4
      %s67 = int_to_ptr.hbm [resolvable:$true] %s66
      %s68 = sshll.u32 [#allocation9], 4
      %s69 = int_to_ptr.vmem [resolvable:$true] %s68
      %71 = dma.hbm_to_vmem [thread:$0]  %s67, 32, %s69, [#allocation10]
    $region29: #{tpu_custom_call.1} parent=1 // pred_fallthru
      _
    // Predicated region
    $region30: #{tpu_custom_call.1} parent=1 // pred_check
      _
    $region31: #{tpu_custom_call.1} parent=1 // pred_check_branch
      %73 = sbr.rel (0) target = $region33
    $region32: #{tpu_custom_call.1} parent=1 // pred_region
      _
    $region33: #{tpu_custom_call.1} parent=1 // pred_fallthru
      _
    // Predicated region
    $region34: #{tpu_custom_call.1} parent=1 // pred_check
      _
    $region35: #{tpu_custom_call.1} parent=1 // pred_check_branch
      %75 = sbr.rel (0) target = $region37
    $region36: #{tpu_custom_call.1} parent=1 // pred_region
      %77 = dma.done [#allocation4], 32
    $region37: #{tpu_custom_call.1} parent=1 // pred_fallthru
      _
    // Predicated region
    $region38: #{tpu_custom_call.1} parent=1 // pred_check
      _
    $region39: #{tpu_custom_call.1} parent=1 // pred_check_branch
      %79 = sbr.rel (0) target = $region41
    $region40: #{tpu_custom_call.1} parent=1 // pred_region
      %81 = dma.done [#allocation7], 256
    $region41: #{tpu_custom_call.1} parent=1 // pred_fallthru
      _
    // Predicated region
    $region42: #{tpu_custom_call.1} parent=1 // pred_check
      _
    $region43: #{tpu_custom_call.1} parent=1 // pred_check_branch
      %83 = sbr.rel (0) target = $region45
    $region44: #{tpu_custom_call.1} parent=1 // pred_region
      %85 = dma.done [#allocation7], 4096
    $region45: #{tpu_custom_call.1} parent=1 // pred_fallthru
      _
    // Predicated region
    $region46: #{tpu_custom_call.1} parent=1 // pred_check
      _
    $region47: #{tpu_custom_call.1} parent=1 // pred_check_branch
      %87 = sbr.rel (0) target = $region49
    $region48: #{tpu_custom_call.1} parent=1 // pred_region
      %89 = dma.done [#allocation10], 32
    $region49: #{tpu_custom_call.1} parent=1 // pred_fallthru
      _
    %v91 = vld [vmem:[%s0] sm:$0x3]
    %v92 = vld [vmem:[#allocation3] sm:$0x3]
    %94 = vrot.lane.b32.xlu0 %v92, 11
    %v95 = vpop.permute.xlu0 %94
    %vm97 = vcmask 89088
    %v98 = vsel %vm97, %v91, %v95
    %vm99 = vcmask 113664
    %v100 = vsel %vm99, %v98, 0.0
    %v101 = vpack.c.bf16 %v100, %v100
    %v102 = vld [vmem:[#allocation6] sm:$0xff]
    %v103 = vld [vmem:[#allocation6 + $0x8] sm:$0xff]
    %v104 = vld [vmem:[%s3] sm:$0x3]
    %v106 = vperm.slane %v104, 0
    %v107 = vperm.slane %v104, 1
    %v112 = vunpack.c.l.b16 %v102
    %v113 = vunpack.c.h.b16 %v102
    %v114 = vunpack.c.l.b16 %v103
    %v115 = vunpack.c.h.b16 %v103
    %v116 = vpack.c.b16 %v114, %v112
    %v117 = vpack.c.b16 %v115, %v113
    %vm120 = vcmask 130048
    %v122 = vsel %vm120, %v101, 0
    %124 = vmatpush.bf16.msra.mxu0 0
    %125 = vmatpush.bf16.msra.mxu0 0
    %126 = vmatpush.bf16.msra.mxu0 0
    %127 = vmatpush.bf16.msra.mxu0 0
    %128 = vmatpush.bf16.msra.mxu0 0
    %129 = vmatpush.bf16.msra.mxu0 0
    %130 = vmatpush.bf16.msra.mxu0 0
    %131 = vmatpush.bf16.msra.mxu0 %v116
    %132 = vmatmul.bf16.gmra.mxu0 %v122
    %v133 = vpop.f32.mrf.mxu0
    %v134 = vadd.f32 %v106, %v133
    %v135 = vpop.f32.mrf.mxu0
    %136 = vdwg.mxu0
    %137 = vmatpush.bf16.msra.mxu0 0
    %138 = vmatpush.bf16.msra.mxu0 0
    %139 = vmatpush.bf16.msra.mxu0 0
    %140 = vmatpush.bf16.msra.mxu0 0
    %141 = vmatpush.bf16.msra.mxu0 0
    %142 = vmatpush.bf16.msra.mxu0 0
    %143 = vmatpush.bf16.msra.mxu0 0
    %144 = vmatpush.bf16.msra.mxu0 %v117
    %145 = vmatmul.bf16.gmra.mxu0 %v122
    %v146 = vpop.f32.mrf.mxu0
    %v147 = vadd.f32 %v107, %v146
    %v148 = vpop.f32.mrf.mxu0
    %149 = vdwg.mxu0
    %v150 = vmax.f32 %v134, 0.0
    %v151 = vmax.f32 %v147, 0.0
    %v152 = vpack.c.bf16 %v150, %v150
    %v153 = vpack.c.bf16 %v151, %v151
    %v154 = vld [vmem:[#allocation8] sm:$0xff]
    %v155 = vld [vmem:[#allocation8 + $0x8] sm:$0xff]
    %v156 = vld [vmem:[#allocation8 + $0x10] sm:$0xff]
    %v157 = vld [vmem:[#allocation8 + $0x18] sm:$0xff]
    %v158 = vld [vmem:[#allocation8 + $0x20] sm:$0xff]
    %v159 = vld [vmem:[#allocation8 + $0x28] sm:$0xff]
    %v160 = vld [vmem:[#allocation8 + $0x30] sm:$0xff]
    %v161 = vld [vmem:[#allocation8 + $0x38] sm:$0xff]
    %v162 = vld [vmem:[#allocation8 + $0x40] sm:$0xff]
    %v163 = vld [vmem:[#allocation8 + $0x48] sm:$0xff]
    %v164 = vld [vmem:[#allocation8 + $0x50] sm:$0xff]
    %v165 = vld [vmem:[#allocation8 + $0x58] sm:$0xff]
    %v166 = vld [vmem:[#allocation8 + $0x60] sm:$0xff]
    %v167 = vld [vmem:[#allocation8 + $0x68] sm:$0xff]
    %v168 = vld [vmem:[#allocation8 + $0x70] sm:$0xff]
    %v169 = vld [vmem:[#allocation8 + $0x78] sm:$0xff]
    %v170 = vld [vmem:[#allocation8 + $0x80] sm:$0xff]
    %v171 = vld [vmem:[#allocation8 + $0x88] sm:$0xff]
    %v172 = vld [vmem:[#allocation8 + $0x90] sm:$0xff]
    %v173 = vld [vmem:[#allocation8 + $0x98] sm:$0xff]
    %v174 = vld [vmem:[#allocation8 + $0xa0] sm:$0xff]
    %v175 = vld [vmem:[#allocation8 + $0xa8] sm:$0xff]
    %v176 = vld [vmem:[#allocation8 + $0xb0] sm:$0xff]
    %v177 = vld [vmem:[#allocation8 + $0xb8] sm:$0xff]
    %v178 = vld [vmem:[#allocation8 + $0xc0] sm:$0xff]
    %v179 = vld [vmem:[#allocation8 + $0xc8] sm:$0xff]
    %v180 = vld [vmem:[#allocation8 + $0xd0] sm:$0xff]
    %v181 = vld [vmem:[#allocation8 + $0xd8] sm:$0xff]
    %v182 = vld [vmem:[#allocation8 + $0xe0] sm:$0xff]
    %v183 = vld [vmem:[#allocation8 + $0xe8] sm:$0xff]
    %v184 = vld [vmem:[#allocation8 + $0xf0] sm:$0xff]
    %v185 = vld [vmem:[#allocation8 + $0xf8] sm:$0xff]
    %v186 = vld [vmem:[%s5] sm:$0x3]
    %v188 = vperm.slane %v186, 0
    %v189 = vperm.slane %v186, 1
    %v224 = vunpack.c.l.b16 %v154
    %v225 = vunpack.c.h.b16 %v154
    %v226 = vunpack.c.l.b16 %v155
    %v227 = vunpack.c.h.b16 %v155
    %v228 = vunpack.c.l.b16 %v156
    %v229 = vunpack.c.h.b16 %v156
    %v230 = vunpack.c.l.b16 %v157
    %v231 = vunpack.c.h.b16 %v157
    %v232 = vunpack.c.l.b16 %v158
    %v233 = vunpack.c.h.b16 %v158
    %v234 = vunpack.c.l.b16 %v159
    %v235 = vunpack.c.h.b16 %v159
    %v236 = vunpack.c.l.b16 %v160
    %v237 = vunpack.c.h.b16 %v160
    %v238 = vunpack.c.l.b16 %v161
    %v239 = vunpack.c.h.b16 %v161
    %v240 = vunpack.c.l.b16 %v162
    %v241 = vunpack.c.h.b16 %v162
    %v242 = vunpack.c.l.b16 %v163
    %v243 = vunpack.c.h.b16 %v163
    %v244 = vunpack.c.l.b16 %v164
    %v245 = vunpack.c.h.b16 %v164
    %v246 = vunpack.c.l.b16 %v165
    %v247 = vunpack.c.h.b16 %v165
    %v248 = vunpack.c.l.b16 %v166
    %v249 = vunpack.c.h.b16 %v166
    %v250 = vunpack.c.l.b16 %v167
    %v251 = vunpack.c.h.b16 %v167
    %v252 = vunpack.c.l.b16 %v168
    %v253 = vunpack.c.h.b16 %v168
    %v254 = vunpack.c.l.b16 %v169
    %v255 = vunpack.c.h.b16 %v169
    %v256 = vunpack.c.l.b16 %v170
    %v257 = vunpack.c.h.b16 %v170
    %v258 = vunpack.c.l.b16 %v171
    %v259 = vunpack.c.h.b16 %v171
    %v260 = vunpack.c.l.b16 %v172
    %v261 = vunpack.c.h.b16 %v172
    %v262 = vunpack.c.l.b16 %v173
    %v263 = vunpack.c.h.b16 %v173
    %v264 = vunpack.c.l.b16 %v174
    %v265 = vunpack.c.h.b16 %v174
    %v266 = vunpack.c.l.b16 %v175
    %v267 = vunpack.c.h.b16 %v175
    %v268 = vunpack.c.l.b16 %v176
    %v269 = vunpack.c.h.b16 %v176
    %v270 = vunpack.c.l.b16 %v177
    %v271 = vunpack.c.h.b16 %v177
    %v272 = vunpack.c.l.b16 %v178
    %v273 = vunpack.c.h.b16 %v178
    %v274 = vunpack.c.l.b16 %v179
    %v275 = vunpack.c.h.b16 %v179
    %v276 = vunpack.c.l.b16 %v180
    %v277 = vunpack.c.h.b16 %v180
    %v278 = vunpack.c.l.b16 %v181
    %v279 = vunpack.c.h.b16 %v181
    %v280 = vunpack.c.l.b16 %v182
    %v281 = vunpack.c.h.b16 %v182
    %v282 = vunpack.c.l.b16 %v183
    %v283 = vunpack.c.h.b16 %v183
    %v284 = vunpack.c.l.b16 %v184
    %v285 = vunpack.c.h.b16 %v184
    %v286 = vunpack.c.l.b16 %v185
    %v287 = vunpack.c.h.b16 %v185
    %v288 = vpack.c.b16 %v226, %v224
    %v289 = vpack.c.b16 %v227, %v225
    %v290 = vpack.c.b16 %v230, %v228
    %v291 = vpack.c.b16 %v231, %v229
    %v292 = vpack.c.b16 %v234, %v232
    %v293 = vpack.c.b16 %v235, %v233
    %v294 = vpack.c.b16 %v238, %v236
    %v295 = vpack.c.b16 %v239, %v237
    %v296 = vpack.c.b16 %v242, %v240
    %v297 = vpack.c.b16 %v243, %v241
    %v298 = vpack.c.b16 %v246, %v244
    %v299 = vpack.c.b16 %v247, %v245
    %v300 = vpack.c.b16 %v250, %v248
    %v301 = vpack.c.b16 %v251, %v249
    %v302 = vpack.c.b16 %v254, %v252
    %v303 = vpack.c.b16 %v255, %v253
    %v304 = vpack.c.b16 %v258, %v256
    %v305 = vpack.c.b16 %v259, %v257
    %v306 = vpack.c.b16 %v262, %v260
    %v307 = vpack.c.b16 %v263, %v261
    %v308 = vpack.c.b16 %v266, %v264
    %v309 = vpack.c.b16 %v267, %v265
    %v310 = vpack.c.b16 %v270, %v268
    %v311 = vpack.c.b16 %v271, %v269
    %v312 = vpack.c.b16 %v274, %v272
    %v313 = vpack.c.b16 %v275, %v273
    %v314 = vpack.c.b16 %v278, %v276
    %v315 = vpack.c.b16 %v279, %v277
    %v316 = vpack.c.b16 %v282, %v280
    %v317 = vpack.c.b16 %v283, %v281
    %v318 = vpack.c.b16 %v286, %v284
    %v319 = vpack.c.b16 %v287, %v285
    %352 = vmatpush.bf16.msra.mxu0 %v302
    %353 = vmatpush.bf16.msra.mxu0 %v300
    %354 = vmatpush.bf16.msra.mxu0 %v298
    %355 = vmatpush.bf16.msra.mxu0 %v296
    %356 = vmatpush.bf16.msra.mxu0 %v294
    %357 = vmatpush.bf16.msra.mxu0 %v292
    %358 = vmatpush.bf16.msra.mxu0 %v290
    %359 = vmatpush.bf16.msra.mxu0 %v288
    %360 = vmatmul.bf16.gmra.mxu0 %v152
    %v361 = vpop.f32.mrf.mxu0
    %v362 = vadd.f32 %v188, %v361
    %v363 = vpop.f32.mrf.mxu0
    %364 = vdwg.mxu0
    %365 = vmatpush.bf16.msra.mxu0 %v318
    %366 = vmatpush.bf16.msra.mxu0 %v316
    %367 = vmatpush.bf16.msra.mxu0 %v314
    %368 = vmatpush.bf16.msra.mxu0 %v312
    %369 = vmatpush.bf16.msra.mxu0 %v310
    %370 = vmatpush.bf16.msra.mxu0 %v308
    %371 = vmatpush.bf16.msra.mxu0 %v306
    %372 = vmatpush.bf16.msra.mxu0 %v304
    %373 = vmatmul.bf16.gmra.mxu0 %v153
    %v374 = vpop.f32.mrf.mxu0
    %v375 = vadd.f32 %v362, %v374
    %v376 = vpop.f32.mrf.mxu0
    %377 = vdwg.mxu0
    %378 = vmatpush.bf16.msra.mxu0 %v303
    %379 = vmatpush.bf16.msra.mxu0 %v301
    %380 = vmatpush.bf16.msra.mxu0 %v299
    %381 = vmatpush.bf16.msra.mxu0 %v297
    %382 = vmatpush.bf16.msra.mxu0 %v295
    %383 = vmatpush.bf16.msra.mxu0 %v293
    %384 = vmatpush.bf16.msra.mxu0 %v291
    %385 = vmatpush.bf16.msra.mxu0 %v289
    %386 = vmatmul.bf16.gmra.mxu0 %v152
    %v387 = vpop.f32.mrf.mxu0
    %v388 = vadd.f32 %v189, %v387
    %v389 = vpop.f32.mrf.mxu0
    %390 = vdwg.mxu0
    %391 = vmatpush.bf16.msra.mxu0 %v319
    %392 = vmatpush.bf16.msra.mxu0 %v317
    %393 = vmatpush.bf16.msra.mxu0 %v315
    %394 = vmatpush.bf16.msra.mxu0 %v313
    %395 = vmatpush.bf16.msra.mxu0 %v311
    %396 = vmatpush.bf16.msra.mxu0 %v309
    %397 = vmatpush.bf16.msra.mxu0 %v307
    %398 = vmatpush.bf16.msra.mxu0 %v305
    %399 = vmatmul.bf16.gmra.mxu0 %v153
    %v400 = vpop.f32.mrf.mxu0
    %v401 = vadd.f32 %v388, %v400
    %v402 = vpop.f32.mrf.mxu0
    %403 = vdwg.mxu0
    %v404 = vmax.f32 %v375, 0.0
    %v405 = vmax.f32 %v401, 0.0
    %v406 = vld [vmem:[#allocation9] sm:$0x3]
    %v408 = vperm.slane %v406, 0
    %v409 = vperm.slane %v406, 1
    %v412 = vmul.f32 %v404, %v408
    %v413 = vmul.f32 %v405, %v409
    %vm414 = vcmask 1041408
    %v415 = vsel %vm414, %v412, 0.0
    %v416 = vsel %vm414, %v413, 0.0
    %v417 = vadd.f32 %v415, %v416
    %418 = vadd.xlane.f32.xlu0 %v417
    %v419 = vpop.xlane.xlu0 %418
    %s420 = sld [smem:[#allocation2]]
    %v421 = vstv %s420
    %v422 = vadd.f32 %v419, %v421
    %v424 = vlaneseq
    %v425 = vand.u32 %v424, 127
    %v426 = vperm.slane %v422, %v425
    %vm428 = vcmask 8192
    %429 = vst.msk [vmem:[#allocation11] sm:$0x1] %vm428, %v426
    // Predicated region
    $region50: #{tpu_custom_call.1} parent=1 // pred_check
      _
    $region51: #{tpu_custom_call.1} parent=1 // pred_check_branch
      %431 = sbr.rel (0) target = $region53
    $region52: #{tpu_custom_call.1} parent=1 // pred_region
      %433 = vsyncadd [#allocation5], 0
      %s435 = sshll.u32 [#allocation11], 4
      %s436 = int_to_ptr.vmem [resolvable:$true] %s435
      %s437 = sshll.u32 %s8, 4
      %s438 = int_to_ptr.hbm [resolvable:$true] %s437
      %440 = dma.vmem_to_hbm [thread:$0]  %s436, 16, %s438, [#allocation5]
    $region53: #{tpu_custom_call.1} parent=1 // pred_fallthru
      _
    // Predicated region
    $region54: #{tpu_custom_call.1} parent=1 // pred_check
      _
    $region55: #{tpu_custom_call.1} parent=1 // pred_check_branch
      %442 = sbr.rel (0) target = $region57
    $region56: #{tpu_custom_call.1} parent=1 // pred_region
      %444 = dma.done [#allocation5], 16
    $region57: #{tpu_custom_call.1} parent=1 // pred_fallthru
      _
    %445 = vsyncpa [#allocation4], 1
    %446 = vsyncpa [#allocation7], 1
    %447 = vsyncpa [#allocation10], 1
    %448 = vsyncpa [#allocation5], 1

</llo_original>
